<compile_context>
chip_gen: v7x
topology: tpu7x:2x2x1
jax: 0.10.0
libtpu: 0.0.40
codegen_flags: <defaults>
</compile_context>

<pallas_src>
import functools
import math

import jax
import jax.numpy as jnp
from jax import lax
from jax.experimental import pallas as pl
from jax.experimental.pallas import tpu as pltpu


# --------------------------------------------------------------------------
# Pallas kernel: one batch element per grid step
# --------------------------------------------------------------------------
def _conv_nn_attn_kernel(x_ref, y_ref, mask_ref, wq_ref, bq_ref,
                         wkv_ref, bkv_ref, wfwc_ref, wo_ref, bias_ref,
                         out_ref, *, K, M):
    """Fused Conv1d_NN_Attn_Spatial (+ folded final channel projection).

    x    : [C, N]     tokens of this batch element
    y    : [C, M]     sampled tokens
    mask : [M, N]     additive (-1e30 on each sample's own token)
    wq   : [N, N]     Wq.T           (Linear over the token axis)
    wkv  : [2M, M]    [Wk; Wv]       (fused k/v Linear over the sample axis)
    wfwc : [Of, K*C]  Wf @ conv taps (channel projection folded into conv)
    wo   : [N, N]     Wo             (Linear over the token axis, applied last)
    bias : [Of, N]    precomputed epilogue bias (folds bconv, bo, bf through Wf/Wo)
    out  : [Of, N]
    """
    f32 = jnp.float32
    bf16 = jnp.bfloat16

    def dn(a, b, ca, cb):  # bf16 MXU matmul, f32 accumulation, no .T
        return lax.dot_general(a.astype(bf16), b.astype(bf16),
                               (((ca,), (cb,)), ((), ())),
                               preferred_element_type=f32)

    x = x_ref[...]                                           # [C, N] f32
    y = y_ref[...]                                           # [C, M] f32

    # q projection (Linear over tokens); fused k/v projection (Linear over
    # samples), produced sample-major so the k/v split is a sublane slice.
    q = dn(x, wq_ref[...], 1, 0) + bq_ref[...]               # [C, N]
    kvT = dn(wkv_ref[...], y, 1, 1) + bkv_ref[...]           # [2M, C]
    kT = kvT[:M, :]                                          # [M, C]
    vT = kvT[M:, :]                                          # [M, C]

    # similarity of every sampled token (rows) to every token (lanes);
    # self-sample entries killed by the additive mask.  Lane-dense [M, N].
    sim = dn(kT, q, 1, 0) + mask_ref[...]                    # [M, N] f32
    Mdim, N = sim.shape
    row = lax.broadcasted_iota(jnp.int32, (Mdim, N), 0)      # hoisted

    # conv1d(kernel=K, stride=K) over groups [self, nn_1, ..., nn_{K-1}]:
    # collect the taps and do ONE contraction against the merged weights.
    taps = [x]                                               # tap 0: the token itself
    for _ in range(1, K):                                    # K small, static unroll
        mx = jnp.max(sim, axis=0, keepdims=True)             # [1, N]
        first = jnp.min(jnp.where(sim >= mx, row, Mdim),
                        axis=0, keepdims=True)               # [1, N] argmax (lowest idx)
        onehot = (row == first).astype(f32)                  # [M, N]
        taps.append(dn(vT, onehot, 0, 0))                    # gather -> [C, N]
        sim = jnp.where(onehot > 0, -1e30, sim)              # exclude chosen sample

    stacked = jnp.concatenate(taps, axis=0)                  # [K*C, N] f32

    # merged conv taps + channel projection, then token mixing (Wo); all bias
    # terms were folded into bias_ref in the wrapper.
    acc = dn(wfwc_ref[...], stacked, 1, 0)                   # [Of, N]
    out_ref[...] = dn(acc, wo_ref[...], 1, 1) + bias_ref[...]


# --------------------------------------------------------------------------
# Pallas wrapper
# --------------------------------------------------------------------------
def conv_nn_attn_spatial(x2, y, mask, params, Wf, bf, K):
    """x2: [B, C, N], y: [B, C, M]  ->  [B, Of, N]."""
    B, C, N = x2.shape
    M = y.shape[2]
    O = params["Wconv"].shape[0]
    Of = Wf.shape[0]
    f32, bf16 = jnp.float32, jnp.bfloat16

    # --- weight preparation (plain JAX, done once) -------------------------
    WqT = params["Wq"].T.astype(bf16)                                 # [N, N]
    WkvT = jnp.concatenate([params["Wk"], params["Wv"]], 0).astype(bf16)  # [2M, M]
    bq = params["bq"].reshape(1, N).astype(f32)
    bkv = jnp.concatenate([params["bk"], params["bv"]]).reshape(2 * M, 1).astype(f32)

    # conv taps [O, C, K] -> [O, K*C]; fold the channel projection Wf in front
    # (Wf acts on channels, Wo on tokens -> they commute), so the kernel mixes
    # tokens on Of rows instead of O.
    Wc2 = jnp.transpose(params["Wconv"], (0, 2, 1)).reshape(O, K * C)
    WfWc = (Wf @ Wc2).astype(bf16)                                    # [Of, K*C]
    Wo = params["Wo"].astype(bf16)                                    # [N, N]

    # epilogue bias folding (exact):
    #   out[f,n] = (WfWc@stacked @ Wo.T)[f,n]
    #            + (Wf@bconv)[f]*sum_{n'}Wo[n,n'] + (sum_o Wf[f,o])*bo[n] + bf[f]
    cb = Wf @ params["bconv"]                                         # [Of]
    sfw = Wf.sum(axis=1)                                              # [Of]
    rowsum_wo = params["Wo"].sum(axis=1)                              # [N]
    bias_ep = (cb[:, None] * rowsum_wo[None, :]
               + sfw[:, None] * params["bo"][None, :]
               + bf[:, None]).astype(f32)                             # [Of, N]

    args = (x2.astype(f32), y.astype(f32), mask.astype(f32),
            WqT, bq, WkvT, bkv, WfWc, Wo, bias_ep)

    def const2d(a):  # weight blocks: constant index -> stay VMEM-resident
        return pl.BlockSpec(a.shape, lambda b: (0, 0))

    grid_spec = pltpu.PrefetchScalarGridSpec(
        num_scalar_prefetch=0,
        grid=(B,),                                   # real batch grid (parallel)
        in_specs=[
            pl.BlockSpec((None, C, N), lambda b: (b, 0, 0)),   # x2 (per batch)
            pl.BlockSpec((None, C, M), lambda b: (b, 0, 0)),   # y  (per batch)
            const2d(mask), const2d(WqT), const2d(bq),
            const2d(WkvT), const2d(bkv), const2d(WfWc),
            const2d(Wo), const2d(bias_ep),
        ],
        out_specs=pl.BlockSpec((None, Of, N), lambda b: (b, 0, 0)),
    )
    return pl.pallas_call(
        functools.partial(_conv_nn_attn_kernel, K=K, M=M),
        out_shape=jax.ShapeDtypeStruct((B, Of, N), f32),
        grid_spec=grid_spec,
        compiler_params=pltpu.CompilerParams(
            dimension_semantics=("parallel",),       # megacore / 2 TCs on v7x
            # footprint here is tiny; sweep per generation at larger N
            # (raise toward 64-96 MiB on v5e/v6e, keep <=48 MiB on v7x).
            vmem_limit_bytes=32 * 1024 * 1024),
    )(*args)


# --------------------------------------------------------------------------
# Plain-JAX glue (reshapes, shuffles, coordinates, sampling indices)
# --------------------------------------------------------------------------
def pixel_unshuffle(x, r):
    B, C, H, W = x.shape
    x = x.reshape(B, C, H // r, r, W // r, r)
    x = jnp.transpose(x, (0, 1, 3, 5, 2, 4))
    return x.reshape(B, C * r * r, H // r, W // r)


def pixel_shuffle(x, r):
    B, C, H, W = x.shape
    c = C // (r * r)
    x = x.reshape(B, c, r, r, H, W)
    x = jnp.transpose(x, (0, 1, 4, 2, 5, 3))
    return x.reshape(B, c, H * r, W * r)


def coordinate_channels(shape):
    B, _, H, W = shape
    xg = jnp.broadcast_to(jnp.arange(H, dtype=jnp.float32)[:, None], (H, W))
    yg = jnp.broadcast_to(jnp.arange(W, dtype=jnp.float32)[None, :], (H, W))
    xy = jnp.stack([xg, yg], axis=0)                       # [2, H, W]
    norm = jnp.sqrt(jnp.sum(xy * xy, axis=0, keepdims=True))
    xyn = xy / jnp.maximum(norm, 1e-12)                    # F.normalize(p=2, dim=1)
    return jnp.broadcast_to(xyn[None], (B, 2, H, W))


def forward(x, params, cfg):
    assert cfg["magnitude_type"] == "similarity"  # TODO(synk): 'distance' branch of inner Conv1d module not implemented
    B, Cin, H, W = x.shape
    s = cfg["shuffle_scale"]
    K = cfg["K"]
    pad = cfg["padding"]
    samples = cfg["samples"]
    loc = cfg["location_channels"]
    pattern = cfg["shuffle_pattern"]

    if pattern in ("B", "BA"):
        if loc:
            coords = coordinate_channels((B, Cin, H, W))
            x1 = pixel_unshuffle(jnp.concatenate([x, coords], axis=1), s)
        else:
            x1 = pixel_unshuffle(x, s)
    elif loc:
        coords = coordinate_channels((B, Cin, H, W))
        x1 = jnp.concatenate([x, coords], axis=1)
    else:
        x1 = x

    _, C1, Hu, Wu = x1.shape
    x_ind = jnp.round(jnp.linspace(0 + pad, Hu - pad - 1, samples)).astype(jnp.int32)
    y_ind = jnp.round(jnp.linspace(0 + pad, Wu - pad - 1, samples)).astype(jnp.int32)
    xg, yg = jnp.meshgrid(x_ind, y_ind, indexing="ij")
    # NOTE: mirrors the reference, which uses x1.shape[2] (height) as 'width';
    # identical for square post-shuffle feature maps.
    flat_indices = xg.reshape(-1) * Hu + yg.reshape(-1)

    M = samples * samples
    N = Hu * Wu
    O1d = params["Wconv"].shape[0]
    x_sample = x1[:, :, xg, yg].reshape(B, C1, M)          # flatten(start_dim=2)
    x2 = x1.reshape(B, C1, N)

    # additive mask [M, N]: -1e30 where sample m IS token n (batch-independent).
    mask = jnp.zeros((M, N), jnp.float32).at[jnp.arange(M), flat_indices].set(-1e30)

    # Fused final channel projection.  If the 1x1 pointwise conv runs AFTER a
    # PixelShuffle, it is equivalent to kron(Wpw, I_{s^2}) applied pre-shuffle,
    # so it folds into the kernel (in front of the conv weights).
    shuffle_after = pattern in ("A", "BA")
    if shuffle_after and loc:
        r2 = s * s
        Wf = jnp.kron(params["Wpw"], jnp.eye(r2, dtype=jnp.float32))  # [Cout*r2, (Cout+2)*r2]
        bf = jnp.repeat(params["bpw"], r2)
    elif loc:
        Wf, bf = params["Wpw"], params["bpw"]
    else:
        Wf = jnp.eye(O1d, dtype=jnp.float32)
        bf = jnp.zeros((O1d,), jnp.float32)

    out = conv_nn_attn_spatial(x2, x_sample, mask, params, Wf, bf, K)  # [B, Of, N]
    Of = Wf.shape[0]
    x4 = out.reshape(B, Of, Hu, Wu)
    return pixel_shuffle(x4, s) if shuffle_after else x4


# --------------------------------------------------------------------------
# Deterministic parameter init (PyTorch-default-like uniform bounds)
# --------------------------------------------------------------------------
def init_params(key, cfg):
    s = cfg["shuffle_scale"]
    Cin, Cout = cfg["in_channels"], cfg["out_channels"]
    loc = cfg["location_channels"]
    H, W = cfg["image_size"]
    if cfg["shuffle_pattern"] in ("B", "BA"):
        c1 = (Cin + 2) * s * s if loc else Cin * s * s
        o1 = (Cout + 2) * s * s if loc else Cout * s * s
    elif loc:
        c1, o1 = Cin + 2, Cout + 2
    else:
        c1, o1 = Cin, Cout
    Ntok = (H * W) // (s * s)
    M = cfg["samples"] ** 2
    K = cfg["K"]

    ks = jax.random.split(key, 12)

    def u(k, shape, fan_in):
        b = 1.0 / math.sqrt(fan_in)
        return jax.random.uniform(k, shape, jnp.float32, -b, b)

    return {
        "Wq": u(ks[0], (Ntok, Ntok), Ntok), "bq": u(ks[1], (Ntok,), Ntok),
        "Wk": u(ks[2], (M, M), M),          "bk": u(ks[3], (M,), M),
        "Wv": u(ks[4], (M, M), M),          "bv": u(ks[5], (M,), M),
        "Wconv": u(ks[6], (o1, c1, K), c1 * K), "bconv": u(ks[7], (o1,), c1 * K),
        "Wo": u(ks[8], (Ntok, Ntok), Ntok), "bo": u(ks[9], (Ntok,), Ntok),
        "Wpw": u(ks[10], (Cout, Cout + 2), Cout + 2), "bpw": u(ks[11], (Cout,), Cout + 2),
    }


# --------------------------------------------------------------------------
if __name__ == "__main__":
    cfg = dict(
        in_channels=4, out_channels=4, K=3, stride=3, padding=0,
        shuffle_pattern="BA", shuffle_scale=2, samples=4,
        image_size=(16, 16), magnitude_type="similarity", location_channels=True,
    )
    key = jax.random.PRNGKey(0)
    kp, kx = jax.random.split(key)
    params = init_params(kp, cfg)
    x = jax.random.normal(kx, (2, cfg["in_channels"], 16, 16), jnp.float32)

    out = forward(x, params, cfg)
    out = jax.block_until_ready(out)
    assert out.shape == (2, cfg["out_channels"], 16, 16), out.shape
    assert bool(jnp.all(jnp.isfinite(out)))
    print("KERNEL_OK")
</pallas_src>

<mosaic_0001>
module attributes {stable_mosaic.version = 11 : i64} {
  func.func @_conv_nn_attn_kernel(%arg0: i32, %arg1: memref<1x24x64xf32, #tpu.memory_space<vmem>>, %arg2: memref<1x24x16xf32, #tpu.memory_space<vmem>>, %arg3: memref<16x64xf32, #tpu.memory_space<vmem>>, %arg4: memref<64x64xbf16, #tpu.memory_space<vmem>>, %arg5: memref<1x64xf32, #tpu.memory_space<vmem>>, %arg6: memref<32x16xbf16, #tpu.memory_space<vmem>>, %arg7: memref<32x1xf32, #tpu.memory_space<vmem>>, %arg8: memref<16x72xbf16, #tpu.memory_space<vmem>>, %arg9: memref<64x64xbf16, #tpu.memory_space<vmem>>, %arg10: memref<16x64xf32, #tpu.memory_space<vmem>>, %arg11: memref<1x16x64xf32, #tpu.memory_space<vmem>>) attributes {dimension_semantics = [#tpu.dimension_semantics<parallel>], iteration_bounds = array<i64: 2>, scalar_prefetch = 0 : i64, scratch_operands = 0 : i64, tpu.core_type = #tpu.core_type<tc>, window_params = [{transform_indices = @transform_0, window_bounds = array<i64: 1, 24, 64>}, {transform_indices = @transform_1, window_bounds = array<i64: 1, 24, 16>}, {pipeline_mode = #tpu.pipeline_mode<synchronous>, transform_indices = @transform_2, window_bounds = array<i64: 16, 64>}, {pipeline_mode = #tpu.pipeline_mode<synchronous>, transform_indices = @transform_3, window_bounds = array<i64: 64, 64>}, {pipeline_mode = #tpu.pipeline_mode<synchronous>, transform_indices = @transform_4, window_bounds = array<i64: 1, 64>}, {pipeline_mode = #tpu.pipeline_mode<synchronous>, transform_indices = @transform_5, window_bounds = array<i64: 32, 16>}, {pipeline_mode = #tpu.pipeline_mode<synchronous>, transform_indices = @transform_6, window_bounds = array<i64: 32, 1>}, {pipeline_mode = #tpu.pipeline_mode<synchronous>, transform_indices = @transform_7, window_bounds = array<i64: 16, 72>}, {pipeline_mode = #tpu.pipeline_mode<synchronous>, transform_indices = @transform_8, window_bounds = array<i64: 64, 64>}, {pipeline_mode = #tpu.pipeline_mode<synchronous>, transform_indices = @transform_9, window_bounds = array<i64: 16, 64>}, {transform_indices = @transform_10, window_bounds = array<i64: 1, 16, 64>}]} {
    %c0 = arith.constant 0 : index
    %c0_0 = arith.constant 0 : index
    %c0_1 = arith.constant 0 : index
    %0 = vector.load %arg1[%c0, %c0_0, %c0_1] : memref<1x24x64xf32, #tpu.memory_space<vmem>>, vector<1x24x64xf32>
    %1 = vector.shape_cast %0 : vector<1x24x64xf32> to vector<24x64xf32>
    %c0_2 = arith.constant 0 : index
    %c0_3 = arith.constant 0 : index
    %c0_4 = arith.constant 0 : index
    %2 = vector.load %arg2[%c0_2, %c0_3, %c0_4] : memref<1x24x16xf32, #tpu.memory_space<vmem>>, vector<1x24x16xf32>
    %3 = vector.shape_cast %2 : vector<1x24x16xf32> to vector<24x16xf32>
    %c0_5 = arith.constant 0 : index
    %c0_6 = arith.constant 0 : index
    %4 = vector.load %arg4[%c0_5, %c0_6] : memref<64x64xbf16, #tpu.memory_space<vmem>>, vector<64x64xbf16>
    %5 = arith.truncf %1 : vector<24x64xf32> to vector<24x64xbf16>
    %cst = arith.constant dense<0.000000e+00> : vector<24x64xf32>
    %6 = tpu.matmul %5, %4, %cst {dimension_numbers = #tpu.dot_dimension_numbers<[1], [0], [0], [1], [0, 0, 1, 1], [], []>} : vector<24x64xbf16>, vector<64x64xbf16>, vector<24x64xf32> -> vector<24x64xf32>
    %c0_7 = arith.constant 0 : index
    %c0_8 = arith.constant 0 : index
    %7 = vector.load %arg5[%c0_7, %c0_8] : memref<1x64xf32, #tpu.memory_space<vmem>>, vector<1x64xf32>
    %8 = vector.broadcast %7 : vector<1x64xf32> to vector<24x64xf32>
    %9 = arith.addf %6, %8 : vector<24x64xf32>
    %c0_9 = arith.constant 0 : index
    %c0_10 = arith.constant 0 : index
    %10 = vector.load %arg6[%c0_9, %c0_10] : memref<32x16xbf16, #tpu.memory_space<vmem>>, vector<32x16xbf16>
    %11 = arith.truncf %3 : vector<24x16xf32> to vector<24x16xbf16>
    %cst_11 = arith.constant dense<0.000000e+00> : vector<32x24xf32>
    %12 = tpu.matmul %10, %11, %cst_11 {dimension_numbers = #tpu.dot_dimension_numbers<[1], [1], [0], [0], [0, 0, 1, 0], [], []>} : vector<32x16xbf16>, vector<24x16xbf16>, vector<32x24xf32> -> vector<32x24xf32>
    %c0_12 = arith.constant 0 : index
    %c0_13 = arith.constant 0 : index
    %13 = vector.load %arg7[%c0_12, %c0_13] : memref<32x1xf32, #tpu.memory_space<vmem>>, vector<32x1xf32>
    %14 = vector.broadcast %13 : vector<32x1xf32> to vector<32x24xf32>
    %15 = arith.addf %12, %14 : vector<32x24xf32>
    %16 = vector.extract_strided_slice %15 {offsets = [0, 0], sizes = [16, 24], strides = [1, 1]} : vector<32x24xf32> to vector<16x24xf32>
    %17 = vector.extract_strided_slice %15 {offsets = [16, 0], sizes = [16, 24], strides = [1, 1]} : vector<32x24xf32> to vector<16x24xf32>
    %18 = arith.truncf %16 : vector<16x24xf32> to vector<16x24xbf16>
    %19 = arith.truncf %9 : vector<24x64xf32> to vector<24x64xbf16>
    %cst_14 = arith.constant dense<0.000000e+00> : vector<16x64xf32>
    %20 = tpu.matmul %18, %19, %cst_14 {dimension_numbers = #tpu.dot_dimension_numbers<[1], [0], [0], [1], [0, 0, 1, 1], [], []>} : vector<16x24xbf16>, vector<24x64xbf16>, vector<16x64xf32> -> vector<16x64xf32>
    %c0_15 = arith.constant 0 : index
    %c0_16 = arith.constant 0 : index
    %21 = vector.load %arg3[%c0_15, %c0_16] : memref<16x64xf32, #tpu.memory_space<vmem>>, vector<16x64xf32>
    %22 = arith.addf %20, %21 : vector<16x64xf32>
    %23 = tpu.iota {dimensions = array<i32: 0>} : vector<16x64xi32>
    %cst_17 = arith.constant dense<0xFF800000> : vector<64xf32>
    %24 = vector.multi_reduction <maximumf>, %22, %cst_17 [0] : vector<16x64xf32> to vector<64xf32>
    %25 = vector.shape_cast %24 : vector<64xf32> to vector<1x64xf32>
    %26 = vector.broadcast %25 : vector<1x64xf32> to vector<16x64xf32>
    %27 = arith.cmpf oge, %22, %26 : vector<16x64xf32>
    %c16_i32 = arith.constant 16 : i32
    %28 = vector.broadcast %c16_i32 : i32 to vector<16x64xi32>
    %29 = arith.select %27, %23, %28 : vector<16x64xi1>, vector<16x64xi32>
    %cst_18 = arith.constant dense<2147483647> : vector<64xi32>
    %30 = vector.multi_reduction <minsi>, %29, %cst_18 [0] : vector<16x64xi32> to vector<64xi32>
    %31 = vector.shape_cast %30 : vector<64xi32> to vector<1x64xi32>
    %32 = vector.broadcast %31 : vector<1x64xi32> to vector<16x64xi32>
    %33 = arith.cmpi eq, %23, %32 : vector<16x64xi32>
    %34 = arith.extui %33 : vector<16x64xi1> to vector<16x64xi32>
    %35 = arith.sitofp %34 : vector<16x64xi32> to vector<16x64xf32>
    %36 = arith.truncf %17 : vector<16x24xf32> to vector<16x24xbf16>
    %37 = arith.truncf %35 : vector<16x64xf32> to vector<16x64xbf16>
    %cst_19 = arith.constant dense<0.000000e+00> : vector<24x64xf32>
    %38 = tpu.matmul %36, %37, %cst_19 {dimension_numbers = #tpu.dot_dimension_numbers<[0], [0], [1], [1], [0, 1, 1, 1], [], []>} : vector<16x24xbf16>, vector<16x64xbf16>, vector<24x64xf32> -> vector<24x64xf32>
    %cst_20 = arith.constant 0.000000e+00 : f32
    %39 = vector.broadcast %cst_20 : f32 to vector<16x64xf32>
    %40 = arith.cmpf ogt, %35, %39 : vector<16x64xf32>
    %cst_21 = arith.constant -1.000000e+30 : f32
    %41 = vector.broadcast %cst_21 : f32 to vector<16x64xf32>
    %42 = arith.select %40, %41, %22 : vector<16x64xi1>, vector<16x64xf32>
    %cst_22 = arith.constant dense<0xFF800000> : vector<64xf32>
    %43 = vector.multi_reduction <maximumf>, %42, %cst_22 [0] : vector<16x64xf32> to vector<64xf32>
    %44 = vector.shape_cast %43 : vector<64xf32> to vector<1x64xf32>
    %45 = vector.broadcast %44 : vector<1x64xf32> to vector<16x64xf32>
    %46 = arith.cmpf oge, %42, %45 : vector<16x64xf32>
    %c16_i32_23 = arith.constant 16 : i32
    %47 = vector.broadcast %c16_i32_23 : i32 to vector<16x64xi32>
    %48 = arith.select %46, %23, %47 : vector<16x64xi1>, vector<16x64xi32>
    %cst_24 = arith.constant dense<2147483647> : vector<64xi32>
    %49 = vector.multi_reduction <minsi>, %48, %cst_24 [0] : vector<16x64xi32> to vector<64xi32>
    %50 = vector.shape_cast %49 : vector<64xi32> to vector<1x64xi32>
    %51 = vector.broadcast %50 : vector<1x64xi32> to vector<16x64xi32>
    %52 = arith.cmpi eq, %23, %51 : vector<16x64xi32>
    %53 = arith.extui %52 : vector<16x64xi1> to vector<16x64xi32>
    %54 = arith.sitofp %53 : vector<16x64xi32> to vector<16x64xf32>
    %55 = arith.truncf %17 : vector<16x24xf32> to vector<16x24xbf16>
    %56 = arith.truncf %54 : vector<16x64xf32> to vector<16x64xbf16>
    %cst_25 = arith.constant dense<0.000000e+00> : vector<24x64xf32>
    %57 = tpu.matmul %55, %56, %cst_25 {dimension_numbers = #tpu.dot_dimension_numbers<[0], [0], [1], [1], [0, 1, 1, 1], [], []>} : vector<16x24xbf16>, vector<16x64xbf16>, vector<24x64xf32> -> vector<24x64xf32>
    %58 = tpu.concatenate %1, %38, %57 in 0 : vector<24x64xf32>, vector<24x64xf32>, vector<24x64xf32> -> vector<72x64xf32>
    %c0_26 = arith.constant 0 : index
    %c0_27 = arith.constant 0 : index
    %59 = vector.load %arg8[%c0_26, %c0_27] : memref<16x72xbf16, #tpu.memory_space<vmem>>, vector<16x72xbf16>
    %60 = arith.truncf %58 : vector<72x64xf32> to vector<72x64xbf16>
    %cst_28 = arith.constant dense<0.000000e+00> : vector<16x64xf32>
    %61 = tpu.matmul %59, %60, %cst_28 {dimension_numbers = #tpu.dot_dimension_numbers<[1], [0], [0], [1], [0, 0, 1, 1], [], []>} : vector<16x72xbf16>, vector<72x64xbf16>, vector<16x64xf32> -> vector<16x64xf32>
    %c0_29 = arith.constant 0 : index
    %c0_30 = arith.constant 0 : index
    %62 = vector.load %arg9[%c0_29, %c0_30] : memref<64x64xbf16, #tpu.memory_space<vmem>>, vector<64x64xbf16>
    %63 = arith.truncf %61 : vector<16x64xf32> to vector<16x64xbf16>
    %cst_31 = arith.constant dense<0.000000e+00> : vector<16x64xf32>
    %64 = tpu.matmul %63, %62, %cst_31 {dimension_numbers = #tpu.dot_dimension_numbers<[1], [1], [0], [0], [0, 0, 1, 0], [], []>} : vector<16x64xbf16>, vector<64x64xbf16>, vector<16x64xf32> -> vector<16x64xf32>
    %c0_32 = arith.constant 0 : index
    %c0_33 = arith.constant 0 : index
    %65 = vector.load %arg10[%c0_32, %c0_33] : memref<16x64xf32, #tpu.memory_space<vmem>>, vector<16x64xf32>
    %66 = arith.addf %64, %65 : vector<16x64xf32>
    %c0_34 = arith.constant 0 : index
    %c0_35 = arith.constant 0 : index
    %c0_36 = arith.constant 0 : index
    %67 = vector.load %arg11[%c0_34, %c0_35, %c0_36] : memref<1x16x64xf32, #tpu.memory_space<vmem>>, vector<1x16x64xf32>
    %68 = vector.shape_cast %67 : vector<1x16x64xf32> to vector<16x64xf32>
    %69 = vector.shape_cast %66 : vector<16x64xf32> to vector<1x16x64xf32>
    tpu.vector_store %arg11[%c0_34, %c0_35, %c0_36], %69 {strides = array<i32>} : memref<1x16x64xf32, #tpu.memory_space<vmem>>, vector<1x16x64xf32>,
    return
  }
  func.func @transform_0(%arg0: i32) -> (i32, i32, i32) {
    %c0_i32 = arith.constant 0 : i32
    %c0_i32_0 = arith.constant 0 : i32
    %c0_i32_1 = arith.constant 0 : i32
    return %arg0, %c0_i32, %c0_i32_0 : i32, i32, i32
  }
  func.func @transform_1(%arg0: i32) -> (i32, i32, i32) {
    %c0_i32 = arith.constant 0 : i32
    %c0_i32_0 = arith.constant 0 : i32
    %c0_i32_1 = arith.constant 0 : i32
    return %arg0, %c0_i32, %c0_i32_0 : i32, i32, i32
  }
  func.func @transform_2(%arg0: i32) -> (i32, i32) {
    %c0_i32 = arith.constant 0 : i32
    %c0_i32_0 = arith.constant 0 : i32
    %c0_i32_1 = arith.constant 0 : i32
    return %c0_i32, %c0_i32_0 : i32, i32
  }
  func.func @transform_3(%arg0: i32) -> (i32, i32) {
    %c0_i32 = arith.constant 0 : i32
    %c0_i32_0 = arith.constant 0 : i32
    %c0_i32_1 = arith.constant 0 : i32
    return %c0_i32, %c0_i32_0 : i32, i32
  }
  func.func @transform_4(%arg0: i32) -> (i32, i32) {
    %c0_i32 = arith.constant 0 : i32
    %c0_i32_0 = arith.constant 0 : i32
    %c0_i32_1 = arith.constant 0 : i32
    return %c0_i32, %c0_i32_0 : i32, i32
  }
  func.func @transform_5(%arg0: i32) -> (i32, i32) {
    %c0_i32 = arith.constant 0 : i32
    %c0_i32_0 = arith.constant 0 : i32
    %c0_i32_1 = arith.constant 0 : i32
    return %c0_i32, %c0_i32_0 : i32, i32
  }
  func.func @transform_6(%arg0: i32) -> (i32, i32) {
    %c0_i32 = arith.constant 0 : i32
    %c0_i32_0 = arith.constant 0 : i32
    %c0_i32_1 = arith.constant 0 : i32
    return %c0_i32, %c0_i32_0 : i32, i32
  }
  func.func @transform_7(%arg0: i32) -> (i32, i32) {
    %c0_i32 = arith.constant 0 : i32
    %c0_i32_0 = arith.constant 0 : i32
    %c0_i32_1 = arith.constant 0 : i32
    return %c0_i32, %c0_i32_0 : i32, i32
  }
  func.func @transform_8(%arg0: i32) -> (i32, i32) {
    %c0_i32 = arith.constant 0 : i32
    %c0_i32_0 = arith.constant 0 : i32
    %c0_i32_1 = arith.constant 0 : i32
    return %c0_i32, %c0_i32_0 : i32, i32
  }
  func.func @transform_9(%arg0: i32) -> (i32, i32) {
    %c0_i32 = arith.constant 0 : i32
    %c0_i32_0 = arith.constant 0 : i32
    %c0_i32_1 = arith.constant 0 : i32
    return %c0_i32, %c0_i32_0 : i32, i32
  }
  func.func @transform_10(%arg0: i32) -> (i32, i32, i32) {
    %c0_i32 = arith.constant 0 : i32
    %c0_i32_0 = arith.constant 0 : i32
    %c0_i32_1 = arith.constant 0 : i32
    return %arg0, %c0_i32, %c0_i32_0 : i32, i32, i32
  }
}

</mosaic_0001>

<llo_original>
// kernel: tpu_custom_call.1
$region0: #{tpu_custom_call.1}
  #allocation0 [shape = 'u32[]', space=smem, size = 0x4, offset = 0x4, fixed_abs, tag = 'smem constant byte address 0x4 - core index']
  #allocation1 [shape = 'u32[144,128]{1,0:T(1,128)}', space=vmem, size = 0x12000, scoped, tag = 'internal scratch']
  %s0 = inlined_call_operand.vmem [shape: f32[2,24,64], index: 0, kind: input, shape index: {}]
  %s1 = inlined_call_operand.vmem [shape: f32[2,24,16], index: 1, kind: input, shape index: {}]
  %s2 = inlined_call_operand.vmem [shape: f32[16,64], index: 2, kind: input, shape index: {}]
  %s3 = inlined_call_operand.vmem [shape: bf16[64,64], index: 3, kind: input, shape index: {}]
  %s4 = inlined_call_operand.hbm [shape: f32[1,64], index: 4, kind: input, shape index: {}]
  %s5 = inlined_call_operand.vmem [shape: bf16[32,16], index: 5, kind: input, shape index: {}]
  %s6 = inlined_call_operand.vmem [shape: f32[32,1], index: 6, kind: input, shape index: {}]
  %s7 = inlined_call_operand.vmem [shape: bf16[16,72], index: 7, kind: input, shape index: {}]
  %s8 = inlined_call_operand.vmem [shape: bf16[64,64], index: 8, kind: input, shape index: {}]
  %s9 = inlined_call_operand.vmem [shape: f32[16,64], index: 9, kind: input, shape index: {}]
  %s10 = inlined_call_operand.hbm [shape: f32[2,16,64], index: 10, kind: output, shape index: {}]
  %s11 = sld [smem:[#allocation0]]
  $region77: #{tpu_custom_call.1} parent=0
    _
  %s13 = ssub.s32 1, %s11
  %s14 = scalar_select 0, %s13, %s11
  $region1: #{tpu_custom_call.1} parent=0
    #allocation2 [shape = 'u8[512]{0}', space=vmem, size = 0x400, scoped, tag = 'input window, operand 4, single buffered']
    #allocation3 [shape = 's32[2]{0}', space=sflag, size = 0x8, scoped, tag = 'scoped memory for tpu_custom_call.1']
    #allocation4 [shape = 's32[2]{0}', space=sflag, size = 0x8, scoped, tag = 'scoped memory for tpu_custom_call.1']
    #allocation5 [shape = 'u8[16384]{0}', space=vmem, size = 0x4000, scoped, tag = 'output window, operand 0']
    %15 = vsyncpa [#allocation3], 0
    %16 = vsyncpa [#allocation4], 0
    %s17 = scalar_lea.sflag [#allocation4], 1
    %18 = vsyncpa %s17, 0
    loop: start=0, step=1, limit=4
    $region2: #{tpu_custom_call.1} parent=1 // loop_pre_header
      _
    $region3: #{tpu_custom_call.1} parent=1 // loop_header
      %s20 = sphi 0, %s24
      %p21 = scmp.ge.s32.totalorder %s20, 4
      %s30 = sphi 0, %s32
      %s33 = sphi 0, %s30
      %s34 = sphi 0, %s33
      %s50 = sphi 0, %s34
      %s56 = sphi 0, %s58
      %s59 = sphi 0, %s56
      %s60 = sphi 0, %s59
      %s76 = sphi 0, %s60
      %s80 = sphi 0, %s80
      %s82 = sphi 0, %s80
      %s83 = sphi 0, %s82
      %s97 = sphi 0, %s83
      %s101 = sphi 0, %s101
      %s103 = sphi 0, %s101
      %s104 = sphi 0, %s103
      %s118 = sphi 0, %s104
      %s122 = sphi 0, %s122
      %s124 = sphi 0, %s122
      %s125 = sphi 0, %s124
      %s139 = sphi 0, %s125
      %s143 = sphi 0, %s143
      %s145 = sphi 0, %s143
      %s146 = sphi 0, %s145
      %s160 = sphi 0, %s146
      %s164 = sphi 0, %s164
      %s166 = sphi 0, %s164
      %s167 = sphi 0, %s166
      %s181 = sphi 0, %s167
      %s185 = sphi 0, %s185
      %s187 = sphi 0, %s185
      %s188 = sphi 0, %s187
      %s202 = sphi 0, %s188
      %s206 = sphi 0, %s206
      %s208 = sphi 0, %s206
      %s209 = sphi 0, %s208
      %s223 = sphi 0, %s209
      %s227 = sphi 0, %s227
      %s229 = sphi 0, %s227
      %s230 = sphi 0, %s229
      %s244 = sphi 0, %s230
      %s250 = sphi 0, %s252
      %s253 = sphi 0, %s250
      %s254 = sphi 0, %s253
      %s270 = sphi 0, %s254
    $region4: #{tpu_custom_call.1} parent=1 // loop_header_branch
      %23 = sbr.rel (%p21) target = $region8
    $region5: #{tpu_custom_call.1} parent=1 // loop_body
      %s25 = ssub.s32 %s20, 1
      %s26 = ssub.s32 %s20, 2
      %s27 = sadd.s32 %s20, 1
      %s28 = ssub.s32 %s20, %s27
      %p29 = scmp.eq.s32.totalorder %s28, 0
      %s31 = sadd.s32 %s30, 1
      %s32 = scalar_select %p29, %s30, %s31
      %p35 = pneg %p29
      %p36 = scmp.eq.s32.totalorder %s20, 1
      %p37 = por %p35, %p36
      %p38 = scmp.ne.s32.totalorder %s30, %s33
      %p39 = scmp.eq.s32.totalorder %s20, 0
      %p40 = por %p38, %p39
      %p41 = scmp.ne.s32.totalorder %s30, %s33
      %p42 = scmp.eq.s32.totalorder %s25, 1
      %p43 = por %p41, %p42
      %p44 = scmp.ne.s32.totalorder %s33, %s34
      %p45 = scmp.eq.s32.totalorder %s25, 0
      %p46 = por %p44, %p45
      %p47 = scmp.ne.s32.totalorder %s33, %s34
      %p48 = scmp.eq.s32.totalorder %s26, 1
      %p49 = por %p47, %p48
      %p51 = scmp.ne.s32.totalorder %s34, %s50
      %p52 = scmp.eq.s32.totalorder %s26, 0
      %p53 = por %p51, %p52
      %s54 = ssub.s32 %s20, %s27
      %p55 = scmp.eq.s32.totalorder %s54, 0
      %s57 = sadd.s32 %s56, 1
      %s58 = scalar_select %p55, %s56, %s57
      %p61 = pneg %p55
      %p62 = scmp.eq.s32.totalorder %s20, 1
      %p63 = por %p61, %p62
      %p64 = scmp.ne.s32.totalorder %s56, %s59
      %p65 = scmp.eq.s32.totalorder %s20, 0
      %p66 = por %p64, %p65
      %p67 = scmp.ne.s32.totalorder %s56, %s59
      %p68 = scmp.eq.s32.totalorder %s25, 1
      %p69 = por %p67, %p68
      %p70 = scmp.ne.s32.totalorder %s59, %s60
      %p71 = scmp.eq.s32.totalorder %s25, 0
      %p72 = por %p70, %p71
      %p73 = scmp.ne.s32.totalorder %s59, %s60
      %p74 = scmp.eq.s32.totalorder %s26, 1
      %p75 = por %p73, %p74
      %p77 = scmp.ne.s32.totalorder %s60, %s76
      %p78 = scmp.eq.s32.totalorder %s26, 0
      %p79 = por %p77, %p78
      %s81 = sadd.s32 %s80, 1
      %p84 = scmp.eq.s32.totalorder %s20, 1
      %p85 = scmp.ne.s32.totalorder %s80, %s82
      %p86 = scmp.eq.s32.totalorder %s20, 0
      %p87 = por %p85, %p86
      %p88 = scmp.ne.s32.totalorder %s80, %s82
      %p89 = scmp.eq.s32.totalorder %s25, 1
      %p90 = por %p88, %p89
      %p91 = scmp.ne.s32.totalorder %s82, %s83
      %p92 = scmp.eq.s32.totalorder %s25, 0
      %p93 = por %p91, %p92
      %p94 = scmp.ne.s32.totalorder %s82, %s83
      %p95 = scmp.eq.s32.totalorder %s26, 1
      %p96 = por %p94, %p95
      %p98 = scmp.ne.s32.totalorder %s83, %s97
      %p99 = scmp.eq.s32.totalorder %s26, 0
      %p100 = por %p98, %p99
      %s102 = sadd.s32 %s101, 1
      %p105 = scmp.eq.s32.totalorder %s20, 1
      %p106 = scmp.ne.s32.totalorder %s101, %s103
      %p107 = scmp.eq.s32.totalorder %s20, 0
      %p108 = por %p106, %p107
      %p109 = scmp.ne.s32.totalorder %s101, %s103
      %p110 = scmp.eq.s32.totalorder %s25, 1
      %p111 = por %p109, %p110
      %p112 = scmp.ne.s32.totalorder %s103, %s104
      %p113 = scmp.eq.s32.totalorder %s25, 0
      %p114 = por %p112, %p113
      %p115 = scmp.ne.s32.totalorder %s103, %s104
      %p116 = scmp.eq.s32.totalorder %s26, 1
      %p117 = por %p115, %p116
      %p119 = scmp.ne.s32.totalorder %s104, %s118
      %p120 = scmp.eq.s32.totalorder %s26, 0
      %p121 = por %p119, %p120
      %s123 = sadd.s32 %s122, 1
      %p126 = scmp.eq.s32.totalorder %s20, 1
      %p127 = scmp.ne.s32.totalorder %s122, %s124
      %p128 = scmp.eq.s32.totalorder %s20, 0
      %p129 = por %p127, %p128
      %p130 = scmp.ne.s32.totalorder %s122, %s124
      %p131 = scmp.eq.s32.totalorder %s25, 1
      %p132 = por %p130, %p131
      %p133 = scmp.ne.s32.totalorder %s124, %s125
      %p134 = scmp.eq.s32.totalorder %s25, 0
      %p135 = por %p133, %p134
      %p136 = scmp.ne.s32.totalorder %s124, %s125
      %p137 = scmp.eq.s32.totalorder %s26, 1
      %p138 = por %p136, %p137
      %p140 = scmp.ne.s32.totalorder %s125, %s139
      %p141 = scmp.eq.s32.totalorder %s26, 0
      %p142 = por %p140, %p141
      %s144 = sadd.s32 %s143, 1
      %p147 = scmp.eq.s32.totalorder %s20, 1
      %p148 = scmp.ne.s32.totalorder %s143, %s145
      %p149 = scmp.eq.s32.totalorder %s20, 0
      %p150 = por %p148, %p149
      %p151 = scmp.ne.s32.totalorder %s143, %s145
      %p152 = scmp.eq.s32.totalorder %s25, 1
      %p153 = por %p151, %p152
      %p154 = scmp.ne.s32.totalorder %s145, %s146
      %p155 = scmp.eq.s32.totalorder %s25, 0
      %p156 = por %p154, %p155
      %p157 = scmp.ne.s32.totalorder %s145, %s146
      %p158 = scmp.eq.s32.totalorder %s26, 1
      %p159 = por %p157, %p158
      %p161 = scmp.ne.s32.totalorder %s146, %s160
      %p162 = scmp.eq.s32.totalorder %s26, 0
      %p163 = por %p161, %p162
      %s165 = sadd.s32 %s164, 1
      %p168 = scmp.eq.s32.totalorder %s20, 1
      %p169 = scmp.ne.s32.totalorder %s164, %s166
      %p170 = scmp.eq.s32.totalorder %s20, 0
      %p171 = por %p169, %p170
      %p172 = scmp.ne.s32.totalorder %s164, %s166
      %p173 = scmp.eq.s32.totalorder %s25, 1
      %p174 = por %p172, %p173
      %p175 = scmp.ne.s32.totalorder %s166, %s167
      %p176 = scmp.eq.s32.totalorder %s25, 0
      %p177 = por %p175, %p176
      %p178 = scmp.ne.s32.totalorder %s166, %s167
      %p179 = scmp.eq.s32.totalorder %s26, 1
      %p180 = por %p178, %p179
      %p182 = scmp.ne.s32.totalorder %s167, %s181
      %p183 = scmp.eq.s32.totalorder %s26, 0
      %p184 = por %p182, %p183
      %s186 = sadd.s32 %s185, 1
      %p189 = scmp.eq.s32.totalorder %s20, 1
      %p190 = scmp.ne.s32.totalorder %s185, %s187
      %p191 = scmp.eq.s32.totalorder %s20, 0
      %p192 = por %p190, %p191
      %p193 = scmp.ne.s32.totalorder %s185, %s187
      %p194 = scmp.eq.s32.totalorder %s25, 1
      %p195 = por %p193, %p194
      %p196 = scmp.ne.s32.totalorder %s187, %s188
      %p197 = scmp.eq.s32.totalorder %s25, 0
      %p198 = por %p196, %p197
      %p199 = scmp.ne.s32.totalorder %s187, %s188
      %p200 = scmp.eq.s32.totalorder %s26, 1
      %p201 = por %p199, %p200
      %p203 = scmp.ne.s32.totalorder %s188, %s202
      %p204 = scmp.eq.s32.totalorder %s26, 0
      %p205 = por %p203, %p204
      %s207 = sadd.s32 %s206, 1
      %p210 = scmp.eq.s32.totalorder %s20, 1
      %p211 = scmp.ne.s32.totalorder %s206, %s208
      %p212 = scmp.eq.s32.totalorder %s20, 0
      %p213 = por %p211, %p212
      %p214 = scmp.ne.s32.totalorder %s206, %s208
      %p215 = scmp.eq.s32.totalorder %s25, 1
      %p216 = por %p214, %p215
      %p217 = scmp.ne.s32.totalorder %s208, %s209
      %p218 = scmp.eq.s32.totalorder %s25, 0
      %p219 = por %p217, %p218
      %p220 = scmp.ne.s32.totalorder %s208, %s209
      %p221 = scmp.eq.s32.totalorder %s26, 1
      %p222 = por %p220, %p221
      %p224 = scmp.ne.s32.totalorder %s209, %s223
      %p225 = scmp.eq.s32.totalorder %s26, 0
      %p226 = por %p224, %p225
      %s228 = sadd.s32 %s227, 1
      %p231 = scmp.eq.s32.totalorder %s20, 1
      %p232 = scmp.ne.s32.totalorder %s227, %s229
      %p233 = scmp.eq.s32.totalorder %s20, 0
      %p234 = por %p232, %p233
      %p235 = scmp.ne.s32.totalorder %s227, %s229
      %p236 = scmp.eq.s32.totalorder %s25, 1
      %p237 = por %p235, %p236
      %p238 = scmp.ne.s32.totalorder %s229, %s230
      %p239 = scmp.eq.s32.totalorder %s25, 0
      %p240 = por %p238, %p239
      %p241 = scmp.ne.s32.totalorder %s229, %s230
      %p242 = scmp.eq.s32.totalorder %s26, 1
      %p243 = por %p241, %p242
      %p245 = scmp.ne.s32.totalorder %s230, %s244
      %p246 = scmp.eq.s32.totalorder %s26, 0
      %p247 = por %p245, %p246
      %s248 = ssub.s32 %s20, %s27
      %p249 = scmp.eq.s32.totalorder %s248, 0
      %s251 = sadd.s32 %s250, 1
      %s252 = scalar_select %p249, %s250, %s251
      %p255 = pneg %p249
      %p256 = scmp.eq.s32.totalorder %s20, 1
      %p257 = por %p255, %p256
      %p258 = scmp.ne.s32.totalorder %s250, %s253
      %p259 = scmp.eq.s32.totalorder %s20, 0
      %p260 = por %p258, %p259
      %p261 = scmp.ne.s32.totalorder %s250, %s253
      %p262 = scmp.eq.s32.totalorder %s25, 1
      %p263 = por %p261, %p262
      %p264 = scmp.ne.s32.totalorder %s253, %s254
      %p265 = scmp.eq.s32.totalorder %s25, 0
      %p266 = por %p264, %p265
      %p267 = scmp.ne.s32.totalorder %s253, %s254
      %p268 = scmp.eq.s32.totalorder %s26, 1
      %p269 = por %p267, %p268
      %p271 = scmp.ne.s32.totalorder %s254, %s270
      %p272 = scmp.eq.s32.totalorder %s26, 0
      %p273 = por %p271, %p272
      %p274 = scmp.le.s32.totalorder 1, %s20
      %p275 = scmp.lt.s32.totalorder %s20, 3
      %p276 = pnand %p274, %p275
      %p277 = pneg %p276
      // Predicated region
      $region9: #{tpu_custom_call.1} parent=5 // pred_check
        _
      $region10: #{tpu_custom_call.1} parent=5 // pred_check_branch
        %279 = sbr.rel (%p276) target = $region12
      $region11: #{tpu_custom_call.1} parent=5 // pred_region
        %s280 = ssub.s32 %s20, 1
        // Predicated region
        $region13: #{tpu_custom_call.1} parent=11 // pred_check
          %p281 = pneg %p93
        $region14: #{tpu_custom_call.1} parent=11 // pred_check_branch
          %283 = sbr.rel (%p281) target = $region16
        $region15: #{tpu_custom_call.1} parent=11 // pred_region
          _
        $region16: #{tpu_custom_call.1} parent=11 // pred_fallthru
          _
        // Predicated region
        $region17: #{tpu_custom_call.1} parent=11 // pred_check
          %p284 = pneg %p114
        $region18: #{tpu_custom_call.1} parent=11 // pred_check_branch
          %286 = sbr.rel (%p284) target = $region20
        $region19: #{tpu_custom_call.1} parent=11 // pred_region
          _
        $region20: #{tpu_custom_call.1} parent=11 // pred_fallthru
          _
        // Predicated region
        $region21: #{tpu_custom_call.1} parent=11 // pred_check
          %p287 = pneg %p135
        $region22: #{tpu_custom_call.1} parent=11 // pred_check_branch
          %289 = sbr.rel (%p287) target = $region24
        $region23: #{tpu_custom_call.1} parent=11 // pred_region
          %s291 = ssub.s32 16, 16
          %292 = vsyncadd [#allocation3], %s291
          %s294 = sshll.u32 [#allocation2], 4
          %s295 = int_to_ptr.vmem [resolvable:$true] %s294
          %297 = dma.hbm_to_vmem [thread:$0]  %s4, 16, %s295, [#allocation3]
        $region24: #{tpu_custom_call.1} parent=11 // pred_fallthru
          _
        // Predicated region
        $region25: #{tpu_custom_call.1} parent=11 // pred_check
          %p298 = pneg %p156
        $region26: #{tpu_custom_call.1} parent=11 // pred_check_branch
          %300 = sbr.rel (%p298) target = $region28
        $region27: #{tpu_custom_call.1} parent=11 // pred_region
          _
        $region28: #{tpu_custom_call.1} parent=11 // pred_fallthru
          _
        // Predicated region
        $region29: #{tpu_custom_call.1} parent=11 // pred_check
          %p301 = pneg %p177
        $region30: #{tpu_custom_call.1} parent=11 // pred_check_branch
          %303 = sbr.rel (%p301) target = $region32
        $region31: #{tpu_custom_call.1} parent=11 // pred_region
          _
        $region32: #{tpu_custom_call.1} parent=11 // pred_fallthru
          _
        // Predicated region
        $region33: #{tpu_custom_call.1} parent=11 // pred_check
          %p304 = pneg %p198
        $region34: #{tpu_custom_call.1} parent=11 // pred_check_branch
          %306 = sbr.rel (%p304) target = $region36
        $region35: #{tpu_custom_call.1} parent=11 // pred_region
          _
        $region36: #{tpu_custom_call.1} parent=11 // pred_fallthru
          _
        // Predicated region
        $region37: #{tpu_custom_call.1} parent=11 // pred_check
          %p307 = pneg %p219
        $region38: #{tpu_custom_call.1} parent=11 // pred_check_branch
          %309 = sbr.rel (%p307) target = $region40
        $region39: #{tpu_custom_call.1} parent=11 // pred_region
          _
        $region40: #{tpu_custom_call.1} parent=11 // pred_fallthru
          _
        // Predicated region
        $region41: #{tpu_custom_call.1} parent=11 // pred_check
          %p310 = pneg %p240
        $region42: #{tpu_custom_call.1} parent=11 // pred_check_branch
          %312 = sbr.rel (%p310) target = $region44
        $region43: #{tpu_custom_call.1} parent=11 // pred_region
          _
        $region44: #{tpu_custom_call.1} parent=11 // pred_fallthru
          _
      $region12: #{tpu_custom_call.1} parent=5 // pred_fallthru
        _
      %p313 = scmp.lt.s32.totalorder %s20, 2
      // Predicated region
      $region45: #{tpu_custom_call.1} parent=5 // pred_check
        %p314 = pneg %p313
      $region46: #{tpu_custom_call.1} parent=5 // pred_check_branch
        %316 = sbr.rel (%p314) target = $region48
      $region47: #{tpu_custom_call.1} parent=5 // pred_region
        // Predicated region
        $region49: #{tpu_custom_call.1} parent=47 // pred_check
          %p317 = pneg %p40
        $region50: #{tpu_custom_call.1} parent=47 // pred_check_branch
          %319 = sbr.rel (%p317) target = $region52
        $region51: #{tpu_custom_call.1} parent=47 // pred_region
          %p320 = scmp.lt.s32.totalorder %s20, 1
          %s321 = scalar_select %p320, %s20, 1
          %s322 = smul.addr %s321, 3
          %s323 = smul.addr %s322, 8
          %s324 = scalar_lea.vmem %s0, %s323
        $region52: #{tpu_custom_call.1} parent=47 // pred_fallthru
          _
        // Predicated region
        $region53: #{tpu_custom_call.1} parent=47 // pred_check
          %p325 = pneg %p66
        $region54: #{tpu_custom_call.1} parent=47 // pred_check_branch
          %327 = sbr.rel (%p325) target = $region56
        $region55: #{tpu_custom_call.1} parent=47 // pred_region
          %p328 = scmp.lt.s32.totalorder %s20, 1
          %s329 = scalar_select %p328, %s20, 1
          %s330 = smul.addr %s329, 3
          %s331 = smul.addr %s330, 8
          %s332 = scalar_lea.vmem %s1, %s331
        $region56: #{tpu_custom_call.1} parent=47 // pred_fallthru
          _
      $region48: #{tpu_custom_call.1} parent=5 // pred_fallthru
        _
      %p333 = scmp.le.s32.totalorder 1, %s20
      %p334 = scmp.lt.s32.totalorder %s20, 3
      %p335 = pnand %p333, %p334
      %p336 = pneg %p335
      // Predicated region
      $region57: #{tpu_custom_call.1} parent=5 // pred_check
        _
      $region58: #{tpu_custom_call.1} parent=5 // pred_check_branch
        %338 = sbr.rel (%p335) target = $region60
      $region59: #{tpu_custom_call.1} parent=5 // pred_region
        %s339 = ssub.s32 %s20, 1
        // Predicated region
        $region61: #{tpu_custom_call.1} parent=59 // pred_check
          %p340 = pneg %p135
        $region62: #{tpu_custom_call.1} parent=59 // pred_check_branch
          %342 = sbr.rel (%p340) target = $region64
        $region63: #{tpu_custom_call.1} parent=59 // pred_region
          %343 = dma.done [#allocation3], 16
        $region64: #{tpu_custom_call.1} parent=59 // pred_fallthru
          _
        %p344 = scmp.lt.s32.totalorder %s25, 1
        %s345 = scalar_select %p344, %s25, 1
        %s346 = smul.addr %s345, 3
        %s347 = smul.addr %s346, 8
        %s348 = scalar_lea.vmem %s0, %s347
        %p349 = pneg %p46
        %p350 = pneg %p43
        %p351 = scmp.lt.s32.totalorder %s25, 1
        %s352 = scalar_select %p351, %s25, 1
        %s353 = smul.addr %s352, 3
        %s354 = smul.addr %s353, 8
        %s355 = scalar_lea.vmem %s1, %s354
        %p356 = pneg %p72
        %p357 = pneg %p69
        %p358 = pneg %p93
        %p359 = pneg %p90
        %p360 = pneg %p114
        %p361 = pneg %p111
        %p362 = pneg %p135
        %p363 = pneg %p132
        %p364 = pneg %p156
        %p365 = pneg %p153
        %p366 = pneg %p177
        %p367 = pneg %p174
        %p368 = pneg %p198
        %p369 = pneg %p195
        %p370 = pneg %p219
        %p371 = pneg %p216
        %p372 = pneg %p240
        %p373 = pneg %p237
        %p374 = pneg %p266
        %p375 = pneg %p263
        %s376 = sand.u32 %s253, 1
        %s377 = scalar_lea.sflag [#allocation4], %s376
        %s378 = sand.u32 %s253, 1
        %s379 = smul.addr %s378, 16
        %s380 = scalar_lea.vmem [#allocation5], %s379
        %p381 = scmp.lt.s32.totalorder %s25, 1
        %s382 = scalar_select %p381, %s25, 1
        %s383 = smul.addr %s382, 3
        %s384 = smul.addr %s383, 8
        %s385 = scalar_lea.vmem %s0, %s384
        %p386 = scmp.lt.s32.totalorder %s25, 1
        %s387 = scalar_select %p386, %s25, 1
        %s388 = smul.addr %s387, 3
        %s389 = smul.addr %s388, 8
        %s390 = scalar_lea.vmem %s1, %s389
        %v392 = vld [vmem:[%s385] sm:$0xff]
        %v393 = vld [vmem:[%s385 + $0x8] sm:$0xff]
        %v394 = vld [vmem:[%s385 + $0x10] sm:$0xff]
        %v395 = vld [vmem:[%s390] sm:$0xff]
        %v396 = vld [vmem:[%s390 + $0x8] sm:$0xff]
        %v397 = vld [vmem:[%s390 + $0x10] sm:$0xff]
        %v398 = vld [vmem:[%s3] sm:$0xf]
        %v399 = vld [vmem:[%s3 + $0x4] sm:$0xf]
        %v400 = vld [vmem:[%s3 + $0x8] sm:$0xf]
        %v401 = vld [vmem:[%s3 + $0xc] sm:$0xf]
        %v402 = vld [vmem:[%s3 + $0x10] sm:$0xf]
        %v403 = vld [vmem:[%s3 + $0x14] sm:$0xf]
        %v404 = vld [vmem:[%s3 + $0x18] sm:$0xf]
        %v405 = vld [vmem:[%s3 + $0x1c] sm:$0xf]
        %v406 = vpack.c.bf16 %v393, %v392
        %v407 = vpack.c.bf16 %v394, %v394
        %v408 = vld [vmem:[#allocation2] sm:$0x1]
        %v410 = vlaneseq
        %v411 = vshrl.u32 %v410, 7
        %v412 = vsub.s32 0, %v411
        %v413 = vrot.slane %v408, %v412
        %v423 = vunpack.c.l.b16 %v398
        %v424 = vunpack.c.l.b16 %v399
        %v425 = vunpack.c.l.b16 %v400
        %v426 = vunpack.c.l.b16 %v401
        %v427 = vunpack.c.l.b16 %v402
        %v428 = vunpack.c.l.b16 %v403
        %v429 = vunpack.c.l.b16 %v404
        %v430 = vunpack.c.l.b16 %v405
        %v431 = vpack.c.b16 %v424, %v423
        %v432 = vpack.c.b16 %v426, %v425
        %v433 = vpack.c.b16 %v428, %v427
        %v434 = vpack.c.b16 %v430, %v429
        %vm439 = vcmask 523264
        %v441 = vsel %vm439, %v406, 0
        %v444 = vsel %vm439, %v407, 0
        %446 = vmatprep.subr.bf16.mxu0 0
        %447 = vmatpush1.bf16.msra.mxu0 %v431
        %448 = vmatprep.subr.bf16.mxu0 0
        %449 = vmatpush1.bf16.msra.mxu0 %v432
        %450 = vmatprep.subr.bf16.mxu0 0
        %451 = vmatpush1.bf16.msra.mxu0 %v433
        %452 = vmatprep.subr.bf16.mxu0 0
        %453 = vmatpush1.bf16.msra.mxu0 %v434
        %454 = vmatprep.subr.bf16.mxu0 0
        %455 = vmatpush1.bf16.msra.mxu0 0
        %456 = vmatprep.subr.bf16.mxu0 0
        %457 = vmatpush1.bf16.msra.mxu0 0
        %458 = vmatprep.subr.bf16.mxu0 0
        %459 = vmatpush1.bf16.msra.mxu0 0
        %460 = vmatprep.subr.bf16.mxu0 0
        %461 = vmatpush1.bf16.msra.mxu0 0
        %462 = vmatprep.subr.bf16.mxu0 0
        %463 = vmatpush1.bf16.msra.mxu0 0
        %464 = vmatprep.subr.bf16.mxu0 0
        %465 = vmatpush1.bf16.msra.mxu0 0
        %466 = vmatprep.subr.bf16.mxu0 0
        %467 = vmatpush1.bf16.msra.mxu0 0
        %468 = vmatprep.subr.bf16.mxu0 0
        %469 = vmatpush1.bf16.msra.mxu0 0
        %470 = vmatprep.subr.bf16.mxu0 0
        %471 = vmatpush1.bf16.msra.mxu0 0
        %472 = vmatprep.subr.bf16.mxu0 0
        %473 = vmatpush1.bf16.msra.mxu0 0
        %474 = vmatprep.subr.bf16.mxu0 0
        %475 = vmatpush1.bf16.msra.mxu0 0
        %476 = vmatprep.subr.bf16.mxu0 0
        %477 = vmatpush1.bf16.msra.mxu0 0
        %478 = vmatprep.mubr.bf16.mxu0 0
        %479 = vmatmul.mubr.bf16.gmra.mrb[0].mxu0 %v441
        %v480 = vpop.f32.mrb[0].mxu0
        %v481 = vadd.f32 %v413, %v480
        %v482 = vpop.f32.mrb[0].mxu0
        %v483 = vpop.f32.mrb[0].mxu0
        %v484 = vadd.f32 %v413, %v483
        %v485 = vpop.f32.mrb[0].mxu0
        %486 = vmatprep.mubr.bf16.mxu0 0
        %487 = vmatmul.mubr.bf16.gmra.mrb[0].mxu0 %v444
        %v488 = vpop.f32.mrb[0].mxu0
        %v489 = vadd.f32 %v413, %v488
        %v490 = vpop.f32.mrb[0].mxu0
        %v491 = vpop.f32.mrb[0].mxu0
        %v492 = vpop.f32.mrb[0].mxu0
        %493 = vdwg.mxu0
        %v494 = vld [vmem:[%s5] sm:$0xf]
        %v495 = vld [vmem:[%s5 + $0x4] sm:$0xf]
        %v496 = vld [vmem:[%s5 + $0x8] sm:$0xf]
        %v497 = vld [vmem:[%s5 + $0xc] sm:$0xf]
        %v498 = vpack.c.bf16 %v396, %v395
        %v499 = vpack.c.bf16 %v397, %v397
        %v500 = vld [vmem:[%s6] sm:$0xff]
        %v501 = vld [vmem:[%s6 + $0x8] sm:$0xff]
        %v502 = vld [vmem:[%s6 + $0x10] sm:$0xff]
        %v503 = vld [vmem:[%s6 + $0x18] sm:$0xff]
        %505 = vset.pattern.permute.xlu0 0
        %506 = vperm.xlu0 %505, %v500
        %v507 = vpop.permute.xlu0 %506
        %510 = vset.pattern.permute.xlu0 0
        %511 = vperm.xlu0 %510, %v501
        %v512 = vpop.permute.xlu0 %511
        %515 = vset.pattern.permute.xlu0 0
        %516 = vperm.xlu0 %515, %v502
        %v517 = vpop.permute.xlu0 %516
        %520 = vset.pattern.permute.xlu0 0
        %521 = vperm.xlu0 %520, %v503
        %v522 = vpop.permute.xlu0 %521
        %v528 = vunpack.c.l.b16 %v494
        %v529 = vunpack.c.l.b16 %v495
        %v530 = vunpack.c.l.b16 %v496
        %v531 = vunpack.c.l.b16 %v497
        %v532 = vpack.c.b16 %v529, %v528
        %v533 = vpack.c.b16 %v531, %v530
        %vm534 = vcmask 130048
        %v536 = vsel %vm534, %v532, 0
        %v539 = vsel %vm534, %v533, 0
        %v542 = vsel %vm534, %v498, 0
        %v545 = vsel %vm534, %v499, 0
        %547 = vmatprep.subr.bf16.mxu0 0
        %548 = vmatpush1.bf16.xpose.msra.mxu0 %v542
        %549 = vmatprep.subr.bf16.mxu0 0
        %550 = vmatpush1.bf16.xpose.msra.mxu0 %v545
        %551 = vmatprep.subr.bf16.mxu0 0
        %552 = vmatpush1.bf16.xpose.msra.mxu0 0
        %553 = vmatprep.subr.bf16.mxu0 0
        %554 = vmatpush1.bf16.xpose.msra.mxu0 0
        %555 = vmatprep.subr.bf16.mxu0 0
        %556 = vmatpush1.bf16.xpose.msra.mxu0 0
        %557 = vmatprep.subr.bf16.mxu0 0
        %558 = vmatpush1.bf16.xpose.msra.mxu0 0
        %559 = vmatprep.subr.bf16.mxu0 0
        %560 = vmatpush1.bf16.xpose.msra.mxu0 0
        %561 = vmatprep.subr.bf16.mxu0 0
        %562 = vmatpush1.bf16.xpose.msra.mxu0 0
        %563 = vmatprep.subr.bf16.mxu0 0
        %564 = vmatpush1.bf16.xpose.msra.mxu0 0
        %565 = vmatprep.subr.bf16.mxu0 0
        %566 = vmatpush1.bf16.xpose.msra.mxu0 0
        %567 = vmatprep.subr.bf16.mxu0 0
        %568 = vmatpush1.bf16.xpose.msra.mxu0 0
        %569 = vmatprep.subr.bf16.mxu0 0
        %570 = vmatpush1.bf16.xpose.msra.mxu0 0
        %571 = vmatprep.subr.bf16.mxu0 0
        %572 = vmatpush1.bf16.xpose.msra.mxu0 0
        %573 = vmatprep.subr.bf16.mxu0 0
        %574 = vmatpush1.bf16.xpose.msra.mxu0 0
        %575 = vmatprep.subr.bf16.mxu0 0
        %576 = vmatpush1.bf16.xpose.msra.mxu0 0
        %577 = vmatprep.subr.bf16.mxu0 0
        %578 = vmatpush1.bf16.xpose.msra.mxu0 0
        %579 = vmatprep.mubr.bf16.mxu0 0
        %580 = vmatmul.mubr.bf16.gmra.mrb[0].mxu0 %v536
        %v581 = vpop.f32.mrb[0].mxu0
        %v582 = vadd.f32 %v507, %v581
        %v583 = vpop.f32.mrb[0].mxu0
        %v584 = vpop.f32.mrb[0].mxu0
        %v585 = vadd.f32 %v512, %v584
        %v586 = vpop.f32.mrb[0].mxu0
        %587 = vmatprep.mubr.bf16.mxu0 0
        %588 = vmatmul.mubr.bf16.gmra.mrb[0].mxu0 %v539
        %v589 = vpop.f32.mrb[0].mxu0
        %v590 = vadd.f32 %v517, %v589
        %v591 = vpop.f32.mrb[0].mxu0
        %v592 = vpop.f32.mrb[0].mxu0
        %v593 = vadd.f32 %v522, %v592
        %v594 = vpop.f32.mrb[0].mxu0
        %595 = vdwg.mxu0
        %v596 = vpack.c.bf16 %v585, %v582
        %v597 = vpack.c.bf16 %v484, %v481
        %v598 = vpack.c.bf16 %v489, %v489
        %v599 = vld [vmem:[%s2] sm:$0xff]
        %v600 = vld [vmem:[%s2 + $0x8] sm:$0xff]
        %vm601 = vcmask 195584
        %v603 = vsel %vm601, %v596, 0
        %vm605 = vcmask 1043456
        %v607 = vsel %vm605, %v598, 0
        %609 = vmatprep.subr.bf16.mxu0 0
        %610 = vmatpush1.bf16.msra.mxu0 %v597
        %611 = vmatprep.subr.bf16.mxu0 0
        %612 = vmatpush1.bf16.msra.mxu0 %v607
        %613 = vmatprep.subr.bf16.mxu0 0
        %614 = vmatpush1.bf16.msra.mxu0 0
        %615 = vmatprep.subr.bf16.mxu0 0
        %616 = vmatpush1.bf16.msra.mxu0 0
        %617 = vmatprep.subr.bf16.mxu0 0
        %618 = vmatpush1.bf16.msra.mxu0 0
        %619 = vmatprep.subr.bf16.mxu0 0
        %620 = vmatpush1.bf16.msra.mxu0 0
        %621 = vmatprep.subr.bf16.mxu0 0
        %622 = vmatpush1.bf16.msra.mxu0 0
        %623 = vmatprep.subr.bf16.mxu0 0
        %624 = vmatpush1.bf16.msra.mxu0 0
        %625 = vmatprep.subr.bf16.mxu0 0
        %626 = vmatpush1.bf16.msra.mxu0 0
        %627 = vmatprep.subr.bf16.mxu0 0
        %628 = vmatpush1.bf16.msra.mxu0 0
        %629 = vmatprep.subr.bf16.mxu0 0
        %630 = vmatpush1.bf16.msra.mxu0 0
        %631 = vmatprep.subr.bf16.mxu0 0
        %632 = vmatpush1.bf16.msra.mxu0 0
        %633 = vmatprep.subr.bf16.mxu0 0
        %634 = vmatpush1.bf16.msra.mxu0 0
        %635 = vmatprep.subr.bf16.mxu0 0
        %636 = vmatpush1.bf16.msra.mxu0 0
        %637 = vmatprep.subr.bf16.mxu0 0
        %638 = vmatpush1.bf16.msra.mxu0 0
        %639 = vmatprep.subr.bf16.mxu0 0
        %640 = vmatpush1.bf16.msra.mxu0 0
        %641 = vmatprep.mubr.bf16.mxu0 0
        %642 = vmatmul.mubr.bf16.gmra.mrb[0].mxu0 %v603
        %v643 = vpop.f32.mrb[0].mxu0
        %v644 = vadd.f32 %v599, %v643
        %v645 = vpop.f32.mrb[0].mxu0
        %v646 = vpop.f32.mrb[0].mxu0
        %v647 = vadd.f32 %v600, %v646
        %v648 = vpop.f32.mrb[0].mxu0
        %649 = vdwg.mxu0
        %v650 = vlaneseq
        %v651 = vshrl.u32 %v650, 7
        %v652 = vadd.s32 %v651, 8
        %v653 = vsel %vm439, %v644, -inf
        %v654 = vsel %vm439, %v647, -inf
        %v655 = vmax.f32 %v653, %v654
        %v656 = vrot.slane %v655, 4
        %v657 = vmax.f32 %v655, %v656
        %v658 = vrot.slane %v657, 2
        %v659 = vmax.f32 %v657, %v658
        %v660 = vrot.slane %v659, 1
        %v661 = vmax.f32 %v659, %v660
        %vm662 = vcmp.ge.f32.partialorder %v644, %v661
        %vm663 = vcmp.ge.f32.partialorder %v647, %v661
        %v664 = vsel %vm662, %v651, 16
        %v665 = vsel %vm663, %v652, 16
        %v666 = vsel %vm439, %v664, 2147483647
        %v667 = vsel %vm439, %v665, 2147483647
        %vm668 = vcmp.lt.s32.totalorder %v666, %v667
        %v669 = vsel %vm668, %v666, %v667
        %v670 = vrot.slane %v669, 4
        %vm671 = vcmp.lt.s32.totalorder %v669, %v670
        %v672 = vsel %vm671, %v669, %v670
        %v673 = vrot.slane %v672, 2
        %vm674 = vcmp.lt.s32.totalorder %v672, %v673
        %v675 = vsel %vm674, %v672, %v673
        %v676 = vrot.slane %v675, 1
        %vm677 = vcmp.lt.s32.totalorder %v675, %v676
        %v678 = vsel %vm677, %v675, %v676
        %vm679 = vcmp.eq.s32.totalorder %v651, %v678
        %vm680 = vcmp.eq.s32.totalorder %v652, %v678
        %v681 = vsel %vm679, 1, 0
        %v682 = vsel %vm680, 1, 0
        %v683 = vcvt.s32.f32 %v681
        %v684 = vcvt.s32.f32 %v682
        %v685 = vpack.c.bf16 %v593, %v590
        %v686 = vpack.c.bf16 %v684, %v683
        %687 = vxpose.xlu0.c.b16.start [1/8] %v685, 128
        %688 = vxpose.xlu0.c.b16.cont [2/8] 0, 128
        %689 = vxpose.xlu0.c.b16.cont [3/8] 0, 128
        %690 = vxpose.xlu0.c.b16.cont [4/8] 0, 128
        %691 = vxpose.xlu0.c.b16.cont [5/8] 0, 128
        %692 = vxpose.xlu0.c.b16.cont [6/8] 0, 128
        %693 = vxpose.xlu0.c.b16.cont [7/8] 0, 128
        %694 = vxpose.xlu0.c.b16.end [8/8] 0, 128
        %v695 = vpop.trf.xlu0
        %v696 = vpop.trf.xlu0
        %v697 = vpop.trf.xlu0
        %v698 = vpop.trf.xlu0
        %v699 = vpop.trf.xlu0
        %v700 = vpop.trf.xlu0
        %v701 = vpop.trf.xlu0
        %v702 = vpop.trf.xlu0
        %v704 = vsel %vm534, %v695, 0
        %v707 = vsel %vm534, %v696, 0
        %709 = vmatprep.subr.bf16.mxu0 0
        %710 = vmatpush1.bf16.msra.mxu0 %v686
        %711 = vmatprep.subr.bf16.mxu0 0
        %712 = vmatpush1.bf16.msra.mxu0 0
        %713 = vmatprep.subr.bf16.mxu0 0
        %714 = vmatpush1.bf16.msra.mxu0 0
        %715 = vmatprep.subr.bf16.mxu0 0
        %716 = vmatpush1.bf16.msra.mxu0 0
        %717 = vmatprep.subr.bf16.mxu0 0
        %718 = vmatpush1.bf16.msra.mxu0 0
        %719 = vmatprep.subr.bf16.mxu0 0
        %720 = vmatpush1.bf16.msra.mxu0 0
        %721 = vmatprep.subr.bf16.mxu0 0
        %722 = vmatpush1.bf16.msra.mxu0 0
        %723 = vmatprep.subr.bf16.mxu0 0
        %724 = vmatpush1.bf16.msra.mxu0 0
        %725 = vmatprep.subr.bf16.mxu0 0
        %726 = vmatpush1.bf16.msra.mxu0 0
        %727 = vmatprep.subr.bf16.mxu0 0
        %728 = vmatpush1.bf16.msra.mxu0 0
        %729 = vmatprep.subr.bf16.mxu0 0
        %730 = vmatpush1.bf16.msra.mxu0 0
        %731 = vmatprep.subr.bf16.mxu0 0
        %732 = vmatpush1.bf16.msra.mxu0 0
        %733 = vmatprep.subr.bf16.mxu0 0
        %734 = vmatpush1.bf16.msra.mxu0 0
        %735 = vmatprep.subr.bf16.mxu0 0
        %736 = vmatpush1.bf16.msra.mxu0 0
        %737 = vmatprep.subr.bf16.mxu0 0
        %738 = vmatpush1.bf16.msra.mxu0 0
        %739 = vmatprep.subr.bf16.mxu0 0
        %740 = vmatpush1.bf16.msra.mxu0 0
        %741 = vmatprep.mubr.bf16.mxu0 0
        %742 = vmatmul.mubr.bf16.gmra.mrb[0].mxu0 %v704
        %v743 = vpop.f32.mrb[0].mxu0
        %v744 = vadd.f32 0.0, %v743
        %v745 = vpop.f32.mrb[0].mxu0
        %v746 = vpop.f32.mrb[0].mxu0
        %v747 = vadd.f32 0.0, %v746
        %v748 = vpop.f32.mrb[0].mxu0
        %749 = vmatprep.mubr.bf16.mxu0 0
        %750 = vmatmul.mubr.bf16.gmra.mrb[0].mxu0 %v707
        %v751 = vpop.f32.mrb[0].mxu0
        %v752 = vadd.f32 0.0, %v751
        %v753 = vpop.f32.mrb[0].mxu0
        %v754 = vpop.f32.mrb[0].mxu0
        %v755 = vpop.f32.mrb[0].mxu0
        %756 = vdwg.mxu0
        %vm757 = vcmp.gt.f32.partialorder %v683, 0.0
        %vm758 = vcmp.gt.f32.partialorder %v684, 0.0
        %v759 = vsel %vm757, -1e+30, %v644
        %v760 = vsel %vm758, -1e+30, %v647
        %v761 = vsel %vm439, %v759, -inf
        %v762 = vsel %vm439, %v760, -inf
        %v763 = vmax.f32 %v761, %v762
        %v764 = vrot.slane %v763, 4
        %v765 = vmax.f32 %v763, %v764
        %v766 = vrot.slane %v765, 2
        %v767 = vmax.f32 %v765, %v766
        %v768 = vrot.slane %v767, 1
        %v769 = vmax.f32 %v767, %v768
        %vm770 = vcmp.ge.f32.partialorder %v759, %v769
        %vm771 = vcmp.ge.f32.partialorder %v760, %v769
        %v772 = vsel %vm770, %v651, 16
        %v773 = vsel %vm771, %v652, 16
        %v774 = vsel %vm439, %v772, 2147483647
        %v775 = vsel %vm439, %v773, 2147483647
        %vm776 = vcmp.lt.s32.totalorder %v774, %v775
        %v777 = vsel %vm776, %v774, %v775
        %v778 = vrot.slane %v777, 4
        %vm779 = vcmp.lt.s32.totalorder %v777, %v778
        %v780 = vsel %vm779, %v777, %v778
        %v781 = vrot.slane %v780, 2
        %vm782 = vcmp.lt.s32.totalorder %v780, %v781
        %v783 = vsel %vm782, %v780, %v781
        %v784 = vrot.slane %v783, 1
        %vm785 = vcmp.lt.s32.totalorder %v783, %v784
        %v786 = vsel %vm785, %v783, %v784
        %vm787 = vcmp.eq.s32.totalorder %v651, %v786
        %vm788 = vcmp.eq.s32.totalorder %v652, %v786
        %v789 = vsel %vm787, 1, 0
        %v790 = vsel %vm788, 1, 0
        %v791 = vcvt.s32.f32 %v789
        %v792 = vcvt.s32.f32 %v790
        %v793 = vpack.c.bf16 %v792, %v791
        %794 = vmatprep.subr.bf16.mxu0 0
        %795 = vmatpush1.bf16.msra.mxu0 %v793
        %796 = vmatprep.subr.bf16.mxu0 0
        %797 = vmatpush1.bf16.msra.mxu0 0
        %798 = vmatprep.subr.bf16.mxu0 0
        %799 = vmatpush1.bf16.msra.mxu0 0
        %800 = vmatprep.subr.bf16.mxu0 0
        %801 = vmatpush1.bf16.msra.mxu0 0
        %802 = vmatprep.subr.bf16.mxu0 0
        %803 = vmatpush1.bf16.msra.mxu0 0
        %804 = vmatprep.subr.bf16.mxu0 0
        %805 = vmatpush1.bf16.msra.mxu0 0
        %806 = vmatprep.subr.bf16.mxu0 0
        %807 = vmatpush1.bf16.msra.mxu0 0
        %808 = vmatprep.subr.bf16.mxu0 0
        %809 = vmatpush1.bf16.msra.mxu0 0
        %810 = vmatprep.subr.bf16.mxu0 0
        %811 = vmatpush1.bf16.msra.mxu0 0
        %812 = vmatprep.subr.bf16.mxu0 0
        %813 = vmatpush1.bf16.msra.mxu0 0
        %814 = vmatprep.subr.bf16.mxu0 0
        %815 = vmatpush1.bf16.msra.mxu0 0
        %816 = vmatprep.subr.bf16.mxu0 0
        %817 = vmatpush1.bf16.msra.mxu0 0
        %818 = vmatprep.subr.bf16.mxu0 0
        %819 = vmatpush1.bf16.msra.mxu0 0
        %820 = vmatprep.subr.bf16.mxu0 0
        %821 = vmatpush1.bf16.msra.mxu0 0
        %822 = vmatprep.subr.bf16.mxu0 0
        %823 = vmatpush1.bf16.msra.mxu0 0
        %824 = vmatprep.subr.bf16.mxu0 0
        %825 = vmatpush1.bf16.msra.mxu0 0
        %826 = vmatprep.mubr.bf16.mxu0 0
        %827 = vmatmul.mubr.bf16.gmra.mrb[0].mxu0 %v704
        %v828 = vpop.f32.mrb[0].mxu0
        %v829 = vadd.f32 0.0, %v828
        %v830 = vpop.f32.mrb[0].mxu0
        %v831 = vpop.f32.mrb[0].mxu0
        %v832 = vadd.f32 0.0, %v831
        %v833 = vpop.f32.mrb[0].mxu0
        %834 = vmatprep.mubr.bf16.mxu0 0
        %835 = vmatmul.mubr.bf16.gmra.mrb[0].mxu0 %v707
        %v836 = vpop.f32.mrb[0].mxu0
        %v837 = vadd.f32 0.0, %v836
        %v838 = vpop.f32.mrb[0].mxu0
        %v839 = vpop.f32.mrb[0].mxu0
        %v840 = vpop.f32.mrb[0].mxu0
        %841 = vdwg.mxu0
        %v842 = vld [vmem:[%s7] sm:$0xf]
        %v843 = vld [vmem:[%s7 + $0x4] sm:$0xf]
        %v844 = vpack.c.bf16 %v744, %v394
        %v845 = vpack.c.bf16 %v752, %v747
        %v846 = vpack.c.bf16 %v832, %v829
        %v847 = vpack.c.bf16 %v837, %v837
        %v850 = vunpack.c.l.b16 %v842
        %v851 = vunpack.c.l.b16 %v843
        %v852 = vpack.c.b16 %v851, %v850
        %vm853 = vcmask 588800
        %v855 = vsel %vm853, %v852, 0
        %v858 = vsel %vm605, %v847, 0
        %860 = vmatprep.subr.bf16.mxu0 0
        %861 = vmatpush1.bf16.msra.mxu0 %v406
        %862 = vmatprep.subr.bf16.mxu0 0
        %863 = vmatpush1.bf16.msra.mxu0 %v844
        %864 = vmatprep.subr.bf16.mxu0 0
        %865 = vmatpush1.bf16.msra.mxu0 %v845
        %866 = vmatprep.subr.bf16.mxu0 0
        %867 = vmatpush1.bf16.msra.mxu0 %v846
        %868 = vmatprep.subr.bf16.mxu0 0
        %869 = vmatpush1.bf16.msra.mxu0 %v858
        %870 = vmatprep.subr.bf16.mxu0 0
        %871 = vmatpush1.bf16.msra.mxu0 0
        %872 = vmatprep.subr.bf16.mxu0 0
        %873 = vmatpush1.bf16.msra.mxu0 0
        %874 = vmatprep.subr.bf16.mxu0 0
        %875 = vmatpush1.bf16.msra.mxu0 0
        %876 = vmatprep.subr.bf16.mxu0 0
        %877 = vmatpush1.bf16.msra.mxu0 0
        %878 = vmatprep.subr.bf16.mxu0 0
        %879 = vmatpush1.bf16.msra.mxu0 0
        %880 = vmatprep.subr.bf16.mxu0 0
        %881 = vmatpush1.bf16.msra.mxu0 0
        %882 = vmatprep.subr.bf16.mxu0 0
        %883 = vmatpush1.bf16.msra.mxu0 0
        %884 = vmatprep.subr.bf16.mxu0 0
        %885 = vmatpush1.bf16.msra.mxu0 0
        %886 = vmatprep.subr.bf16.mxu0 0
        %887 = vmatpush1.bf16.msra.mxu0 0
        %888 = vmatprep.subr.bf16.mxu0 0
        %889 = vmatpush1.bf16.msra.mxu0 0
        %890 = vmatprep.subr.bf16.mxu0 0
        %891 = vmatpush1.bf16.msra.mxu0 0
        %892 = vmatprep.mubr.bf16.mxu0 0
        %893 = vmatmul.mubr.bf16.gmra.mrb[0].mxu0 %v855
        %v894 = vpop.f32.mrb[0].mxu0
        %v895 = vadd.f32 0.0, %v894
        %v896 = vpop.f32.mrb[0].mxu0
        %v897 = vpop.f32.mrb[0].mxu0
        %v898 = vadd.f32 0.0, %v897
        %v899 = vpop.f32.mrb[0].mxu0
        %900 = vdwg.mxu0
        %v901 = vld [vmem:[%s8] sm:$0xf]
        %v902 = vld [vmem:[%s8 + $0x4] sm:$0xf]
        %v903 = vld [vmem:[%s8 + $0x8] sm:$0xf]
        %v904 = vld [vmem:[%s8 + $0xc] sm:$0xf]
        %v905 = vld [vmem:[%s8 + $0x10] sm:$0xf]
        %v906 = vld [vmem:[%s8 + $0x14] sm:$0xf]
        %v907 = vld [vmem:[%s8 + $0x18] sm:$0xf]
        %v908 = vld [vmem:[%s8 + $0x1c] sm:$0xf]
        %v909 = vpack.c.bf16 %v898, %v895
        %v910 = vld [vmem:[%s9] sm:$0xff]
        %v911 = vld [vmem:[%s9 + $0x8] sm:$0xff]
        %v920 = vunpack.c.l.b16 %v901
        %v921 = vunpack.c.l.b16 %v902
        %v922 = vunpack.c.l.b16 %v903
        %v923 = vunpack.c.l.b16 %v904
        %v924 = vunpack.c.l.b16 %v905
        %v925 = vunpack.c.l.b16 %v906
        %v926 = vunpack.c.l.b16 %v907
        %v927 = vunpack.c.l.b16 %v908
        %v928 = vpack.c.b16 %v921, %v920
        %v929 = vpack.c.b16 %v923, %v922
        %v930 = vpack.c.b16 %v925, %v924
        %v931 = vpack.c.b16 %v927, %v926
        %v933 = vsel %vm439, %v909, 0
        %v936 = vsel %vm439, %v928, 0
        %v939 = vsel %vm439, %v929, 0
        %v942 = vsel %vm439, %v930, 0
        %v945 = vsel %vm439, %v931, 0
        %947 = vmatprep.subr.bf16.mxu0 0
        %948 = vmatpush1.bf16.xpose.msra.mxu0 %v936
        %949 = vmatprep.subr.bf16.mxu0 0
        %950 = vmatpush1.bf16.xpose.msra.mxu0 %v939
        %951 = vmatprep.subr.bf16.mxu0 0
        %952 = vmatpush1.bf16.xpose.msra.mxu0 %v942
        %953 = vmatprep.subr.bf16.mxu0 0
        %954 = vmatpush1.bf16.xpose.msra.mxu0 %v945
        %955 = vmatprep.subr.bf16.mxu0 0
        %956 = vmatpush1.bf16.xpose.msra.mxu0 0
        %957 = vmatprep.subr.bf16.mxu0 0
        %958 = vmatpush1.bf16.xpose.msra.mxu0 0
        %959 = vmatprep.subr.bf16.mxu0 0
        %960 = vmatpush1.bf16.xpose.msra.mxu0 0
        %961 = vmatprep.subr.bf16.mxu0 0
        %962 = vmatpush1.bf16.xpose.msra.mxu0 0
        %963 = vmatprep.subr.bf16.mxu0 0
        %964 = vmatpush1.bf16.xpose.msra.mxu0 0
        %965 = vmatprep.subr.bf16.mxu0 0
        %966 = vmatpush1.bf16.xpose.msra.mxu0 0
        %967 = vmatprep.subr.bf16.mxu0 0
        %968 = vmatpush1.bf16.xpose.msra.mxu0 0
        %969 = vmatprep.subr.bf16.mxu0 0
        %970 = vmatpush1.bf16.xpose.msra.mxu0 0
        %971 = vmatprep.subr.bf16.mxu0 0
        %972 = vmatpush1.bf16.xpose.msra.mxu0 0
        %973 = vmatprep.subr.bf16.mxu0 0
        %974 = vmatpush1.bf16.xpose.msra.mxu0 0
        %975 = vmatprep.subr.bf16.mxu0 0
        %976 = vmatpush1.bf16.xpose.msra.mxu0 0
        %977 = vmatprep.subr.bf16.mxu0 0
        %978 = vmatpush1.bf16.xpose.msra.mxu0 0
        %979 = vmatprep.mubr.bf16.mxu0 0
        %980 = vmatmul.mubr.bf16.gmra.mrb[0].mxu0 %v933
        %v981 = vpop.f32.mrb[0].mxu0
        %v982 = vadd.f32 %v910, %v981
        %v983 = vpop.f32.mrb[0].mxu0
        %v984 = vpop.f32.mrb[0].mxu0
        %v985 = vadd.f32 %v911, %v984
        %v986 = vpop.f32.mrb[0].mxu0
        %987 = vdwg.mxu0
        %988 = vst.msk [vmem:[%s380] sm:$0xff] %vm439, %v982
        %989 = vst.msk [vmem:[%s380 + $0x8] sm:$0xff] %vm439, %v985
        %s990 = sand.u32 %s253, 1
        %s991 = scalar_lea.sflag [#allocation4], %s990
        %s992 = sand.u32 %s253, 1
        %s993 = smul.addr %s992, 16
        %s994 = scalar_lea.vmem [#allocation5], %s993
        // Predicated region
        $region65: #{tpu_custom_call.1} parent=59 // pred_check
          %p995 = pneg %p263
        $region66: #{tpu_custom_call.1} parent=59 // pred_check_branch
          %997 = sbr.rel (%p995) target = $region68
        $region67: #{tpu_custom_call.1} parent=59 // pred_region
          %s999 = ssub.s32 256, 256
          %1000 = vsyncadd %s991, %s999
          %s1001 = smul.addr %s25, 2
          %s1002 = smul.addr %s1001, 128
          %s1003 = scalar_lea.hbm %s10, %s1002
          %s1004 = sshll.u32 %s994, 4
          %s1005 = int_to_ptr.vmem [resolvable:$true] %s1004
          %1010 = dma.vmem_to_hbm [thread:$0]  %s1005, 256, %s1003, %s991, 128, 128, 8
        $region68: #{tpu_custom_call.1} parent=59 // pred_fallthru
          _
      $region60: #{tpu_custom_call.1} parent=5 // pred_fallthru
        _
      %p1011 = scmp.le.s32.totalorder 2, %s20
      // Predicated region
      $region69: #{tpu_custom_call.1} parent=5 // pred_check
        %p1012 = pneg %p1011
      $region70: #{tpu_custom_call.1} parent=5 // pred_check_branch
        %1014 = sbr.rel (%p1012) target = $region72
      $region71: #{tpu_custom_call.1} parent=5 // pred_region
        %s1015 = ssub.s32 %s20, 2
        // Predicated region
        $region73: #{tpu_custom_call.1} parent=71 // pred_check
          %p1016 = pneg %p269
        $region74: #{tpu_custom_call.1} parent=71 // pred_check_branch
          %1018 = sbr.rel (%p1016) target = $region76
        $region75: #{tpu_custom_call.1} parent=71 // pred_region
          %s1019 = sand.u32 %s254, 1
          %s1020 = scalar_lea.sflag [#allocation4], %s1019
          %s1021 = sand.u32 %s254, 1
          %s1022 = smul.addr %s1021, 16
          %s1023 = scalar_lea.vmem [#allocation5], %s1022
          %1024 = dma.done %s1020, 256
        $region76: #{tpu_custom_call.1} parent=71 // pred_fallthru
          _
      $region72: #{tpu_custom_call.1} parent=5 // pred_fallthru
        _
    $region6: #{tpu_custom_call.1} parent=1 // loop_footer
      %s24 = sadd.s32 1, %s20
    $region7: #{tpu_custom_call.1} parent=1 // loop_footer_branch
      %19 = sbr.rel target = $region3
    $region8: #{tpu_custom_call.1} parent=1 // loop_exit
      _
    %1025 = vsyncpa [#allocation3], 1
    %s1026 = scalar_lea.sflag [#allocation3], 1
    %1027 = vsyncpa %s1026, 1
    %1028 = vsyncpa [#allocation4], 1
    %s1029 = scalar_lea.sflag [#allocation4], 1
    %1030 = vsyncpa %s1029, 1

</llo_original>
